<compile_context>
chip_gen: v7x
topology: tpu7x:2x2x1
jax: 0.10.0
libtpu: 0.0.40
codegen_flags: <defaults>
</compile_context>

<pallas_src>
import functools

import jax
import jax.numpy as jnp
from jax.experimental import pallas as pl
from jax.experimental.pallas import tpu as pltpu

_LANES = 128
_MIN_KERNEL_ELEMS = 1 << 16      # below this a pallas_call launch costs more than jnp
_DEFAULT_VMEM_BUDGET = 14 << 20  # stay under v5e's 16 MiB default scoped-VMEM limit


def _ceil_div(a, b):
    return -(-a // b)


def _sublane_multiple(dtype):
    # f32 -> 8, bf16/f16 -> 16, int8/fp8 -> 32 (sub-32-bit dtypes pack along sublanes).
    return max(8, 32 // jnp.dtype(dtype).itemsize)


def _qsoftplus_math(x_f32, q):
    """Numerically stable q-softplus on an f32 array (kernel + small-input path)."""
    a = 1.0 - q
    af = jnp.float32(a)
    inv_af = jnp.float32(1.0 / a)
    base = jnp.maximum(1.0 + af * x_f32, 0.0)
    t = jnp.log(base) * inv_af                 # log(qexp); -inf when base == 0
    u = af * jnp.log1p(jnp.exp(-jnp.abs(t)))   # a*(softplus(t) - max(t,0)) in (0, a*ln2]
    b1 = jnp.maximum(base, 1.0)                # exp(a * max(t, 0))
    if a <= 0.05:
        # u <= a*ln2 <= 0.035: cubic Taylor of expm1(u) on the VPU (err < 1e-8 abs),
        # saving one EUP transcendental per element.
        em1_u = u * (1.0 + u * (0.5 + u * (1.0 / 6.0)))
    else:
        em1_u = jnp.expm1(u)
    # expm1(a*softplus(t)) = (b1 - 1) + b1*expm1(u); divide by a -> qlog(1 + qexp).
    return (b1 - 1.0) * inv_af + b1 * em1_u * inv_af


def _qsoftplus_kernel(x_ref, o_ref, *, q):
    x = x_ref[...].astype(jnp.float32)
    o_ref[...] = _qsoftplus_math(x, q).astype(o_ref.dtype)


def _choose_tile_rows(rows, tile_rows, sub, itemsize, vmem_budget):
    """Block rows: multiple of `sub`, >= 2 (even) grid steps so both v7x
    TensorCores get work, and in+out double buffers within the VMEM budget."""
    cap = max(sub, (vmem_budget // (4 * _LANES * itemsize)) // sub * sub)
    tile_rows = max(sub, min(int(tile_rows), cap))
    steps = max(2, _ceil_div(rows, tile_rows))
    steps += steps % 2                          # even step count -> balanced TC split
    tr = max(sub, _ceil_div(_ceil_div(rows, steps), sub) * sub)
    return min(tr, cap)


def q_softplus(x, q=0.99, *, tile_rows=4096, vmem_limit_bytes=None, force_kernel=False):
    """Applies Tsallis q-softplus elementwise via a Pallas TPU kernel.

    Only q < 1 is supported (q == 1 divides by zero; q > 1 is ill-defined at
    the kink of the q-exponential).
    """
    if not (q < 1.0):
        raise ValueError("q_softplus kernel supports q < 1 only.")
    q = float(q)

    orig_shape, orig_dtype = x.shape, x.dtype
    n = int(x.size)
    if n == 0:
        return x

    # Tiny-input fast path: fixed pallas_call launch overhead dominates.
    if n < _MIN_KERNEL_ELEMS and not force_kernel:
        y = _qsoftplus_math(x.reshape(-1).astype(jnp.float32), q)
        return y.astype(orig_dtype).reshape(orig_shape)

    flat = x.reshape(-1)                        # contiguous reshape: no HBM copy

    # Lane-dense (rows, 128) view of the 128-aligned prefix.  No pad / slice HBM
    # passes: ragged row counts are handled by Pallas' partial last block (only
    # the *block* shape must be (sub, 128)-aligned).
    lane_n = (n // _LANES) * _LANES
    if lane_n == 0:
        y = _qsoftplus_math(flat.astype(jnp.float32), q)
        return y.astype(orig_dtype).reshape(orig_shape)

    rows = lane_n // _LANES
    x2d = (flat if lane_n == n else flat[:lane_n]).reshape(rows, _LANES)

    itemsize = jnp.dtype(orig_dtype).itemsize
    sub = _sublane_multiple(orig_dtype)
    budget = int(vmem_limit_bytes) if vmem_limit_bytes is not None else _DEFAULT_VMEM_BUDGET
    tr = _choose_tile_rows(rows, tile_rows, sub, itemsize, budget)
    grid = (_ceil_div(rows, tr),)

    n_trans = 3 if (1.0 - q) <= 0.05 else 4
    cost = pl.CostEstimate(
        flops=12 * lane_n,
        transcendentals=n_trans * lane_n,
        bytes_accessed=2 * lane_n * itemsize,   # in + out, same dtype
    )

    out2d = pl.pallas_call(
        functools.partial(_qsoftplus_kernel, q=q),
        out_shape=jax.ShapeDtypeStruct((rows, _LANES), orig_dtype),
        grid_spec=pltpu.PrefetchScalarGridSpec(
            num_scalar_prefetch=0,
            grid=grid,
            in_specs=[pl.BlockSpec((tr, _LANES), lambda i: (i, 0))],
            out_specs=pl.BlockSpec((tr, _LANES), lambda i: (i, 0)),
        ),
        compiler_params=pltpu.CompilerParams(
            dimension_semantics=("parallel",),
            vmem_limit_bytes=int(vmem_limit_bytes) if vmem_limit_bytes is not None else None,
        ),
        cost_estimate=cost,
    )(x2d)

    out_flat = out2d.reshape(-1)
    if lane_n != n:
        # TODO(synk): the tiny (<128 elem) lane tail forces one concat copy of the
        # output; acceptable since NN activation sizes are virtually always
        # 128-divisible (then this branch is never taken and traffic is exactly 2n).
        tail = _qsoftplus_math(flat[lane_n:].astype(jnp.float32), q).astype(orig_dtype)
        out_flat = jnp.concatenate([out_flat, tail])
    return out_flat.reshape(orig_shape)


def _q_softplus_ref(x, q=0.99):
    """Naive reference implementation (the PyTorch module's definition)."""
    x = x.astype(jnp.float32)
    qexp = jnp.maximum(1.0 + (1.0 - q) * x, 0.0) ** (1.0 / (1.0 - q))
    y = 1.0 + qexp
    return ((y ** (1.0 - q)) - 1.0) / (1.0 - q)


if __name__ == "__main__":
    key = jax.random.PRNGKey(0)
    k1, k2, k3, k4 = jax.random.split(key, 4)

    # 1) NCHW activation matching the PyTorch module (lane-aligned, zero pad/slice).
    x1 = jax.random.normal(k1, (2, 4, 16, 16), dtype=jnp.float32) * 3.0
    o1 = jax.block_until_ready(q_softplus(x1, q=0.99, force_kernel=True))
    assert o1.shape == x1.shape and o1.dtype == x1.dtype
    assert jnp.allclose(o1, _q_softplus_ref(x1, 0.99), atol=1e-4, rtol=1e-4), (
        float(jnp.max(jnp.abs(o1 - _q_softplus_ref(x1, 0.99)))))

    # 2) Lane-ragged size (n % 128 != 0): aligned-prefix kernel + tiny jnp tail.
    x2 = jax.random.normal(k2, (3, 5, 7, 11), dtype=jnp.float32) * 3.0
    o2 = jax.block_until_ready(q_softplus(x2, q=0.99, force_kernel=True))
    assert o2.shape == x2.shape
    assert jnp.allclose(o2, _q_softplus_ref(x2, 0.99), atol=1e-4, rtol=1e-4)

    # 3) Multi-step grid with a partial last block (1024 rows, 384-row tile request).
    x3 = jax.random.normal(k3, (4, 8, 64, 64), dtype=jnp.float32) * 3.0
    o3 = jax.block_until_ready(q_softplus(x3, q=0.99, tile_rows=384))
    assert o3.shape == x3.shape
    assert jnp.allclose(o3, _q_softplus_ref(x3, 0.99), atol=1e-4, rtol=1e-4)

    # 4) bf16 I/O exercises the 16-row sublane-packing block rounding.
    x4 = (jax.random.normal(k4, (4, 8, 64, 64), dtype=jnp.float32) * 3.0).astype(jnp.bfloat16)
    o4 = jax.block_until_ready(q_softplus(x4, q=0.99))
    assert o4.dtype == jnp.bfloat16
    ref4 = _q_softplus_ref(x4.astype(jnp.float32), 0.99)
    assert jnp.allclose(o4.astype(jnp.float32), ref4, atol=3e-2, rtol=3e-2)

    # 5) n % 128 == 0 but rows % 8 != 0: ragged rows, still zero pad/slice.
    x5 = jax.random.normal(k1, (2, 4, 12, 16), dtype=jnp.float32) * 3.0
    o5 = jax.block_until_ready(q_softplus(x5, q=0.99, force_kernel=True))
    assert jnp.allclose(o5, _q_softplus_ref(x5, 0.99), atol=1e-4, rtol=1e-4)

    # 6) q far from 1: takes the exact expm1 path (no polynomial shortcut).
    o6 = jax.block_until_ready(q_softplus(x1, q=0.5, force_kernel=True))
    assert jnp.allclose(o6, _q_softplus_ref(x1, 0.5), atol=1e-4, rtol=1e-4)

    print("KERNEL_OK")
</pallas_src>

<mosaic_0001>
module attributes {stable_mosaic.version = 11 : i64} {
  func.func @_qsoftplus_kernel(%arg0: i32, %arg1: memref<8x128xf32, #tpu.memory_space<vmem>>, %arg2: memref<8x128xf32, #tpu.memory_space<vmem>>) attributes {dimension_semantics = [#tpu.dimension_semantics<parallel>], iteration_bounds = array<i64: 2>, scalar_prefetch = 0 : i64, scratch_operands = 0 : i64, tpu.core_type = #tpu.core_type<tc>, window_params = [{transform_indices = @transform_0, window_bounds = array<i64: 8, 128>}, {transform_indices = @transform_1, window_bounds = array<i64: 8, 128>}]} {
    %c0 = arith.constant 0 : index
    %c0_0 = arith.constant 0 : index
    %0 = vector.load %arg1[%c0, %c0_0] : memref<8x128xf32, #tpu.memory_space<vmem>>, vector<8x128xf32>
    %cst = arith.constant 0.00999999977 : f32
    %1 = vector.broadcast %cst : f32 to vector<8x128xf32>
    %2 = arith.mulf %1, %0 : vector<8x128xf32>
    %cst_1 = arith.constant 1.000000e+00 : f32
    %3 = vector.broadcast %cst_1 : f32 to vector<8x128xf32>
    %4 = arith.addf %3, %2 : vector<8x128xf32>
    %cst_2 = arith.constant 0.000000e+00 : f32
    %5 = vector.broadcast %cst_2 : f32 to vector<8x128xf32>
    %6 = arith.maximumf %4, %5 : vector<8x128xf32>
    %7 = math.log %6 : vector<8x128xf32>
    %cst_3 = arith.constant 1.000000e+02 : f32
    %8 = vector.broadcast %cst_3 : f32 to vector<8x128xf32>
    %9 = arith.mulf %7, %8 : vector<8x128xf32>
    %10 = math.absf %9 : vector<8x128xf32>
    %cst_4 = arith.constant 0.000000e+00 : f32
    %11 = vector.broadcast %cst_4 : f32 to vector<8x128xf32>
    %12 = arith.subf %11, %10 : vector<8x128xf32>
    %13 = math.exp %12 : vector<8x128xf32>
    %14 = math.log1p %13 : vector<8x128xf32>
    %cst_5 = arith.constant 0.00999999977 : f32
    %15 = vector.broadcast %cst_5 : f32 to vector<8x128xf32>
    %16 = arith.mulf %15, %14 : vector<8x128xf32>
    %cst_6 = arith.constant 1.000000e+00 : f32
    %17 = vector.broadcast %cst_6 : f32 to vector<8x128xf32>
    %18 = arith.maximumf %6, %17 : vector<8x128xf32>
    %cst_7 = arith.constant 0.166666672 : f32
    %19 = vector.broadcast %cst_7 : f32 to vector<8x128xf32>
    %20 = arith.mulf %16, %19 : vector<8x128xf32>
    %cst_8 = arith.constant 5.000000e-01 : f32
    %21 = vector.broadcast %cst_8 : f32 to vector<8x128xf32>
    %22 = arith.addf %21, %20 : vector<8x128xf32>
    %23 = arith.mulf %16, %22 : vector<8x128xf32>
    %cst_9 = arith.constant 1.000000e+00 : f32
    %24 = vector.broadcast %cst_9 : f32 to vector<8x128xf32>
    %25 = arith.addf %24, %23 : vector<8x128xf32>
    %26 = arith.mulf %16, %25 : vector<8x128xf32>
    %cst_10 = arith.constant 1.000000e+00 : f32
    %27 = vector.broadcast %cst_10 : f32 to vector<8x128xf32>
    %28 = arith.subf %18, %27 : vector<8x128xf32>
    %cst_11 = arith.constant 1.000000e+02 : f32
    %29 = vector.broadcast %cst_11 : f32 to vector<8x128xf32>
    %30 = arith.mulf %28, %29 : vector<8x128xf32>
    %31 = arith.mulf %18, %26 : vector<8x128xf32>
    %cst_12 = arith.constant 1.000000e+02 : f32
    %32 = vector.broadcast %cst_12 : f32 to vector<8x128xf32>
    %33 = arith.mulf %31, %32 : vector<8x128xf32>
    %34 = arith.addf %30, %33 : vector<8x128xf32>
    %c0_13 = arith.constant 0 : index
    %c0_14 = arith.constant 0 : index
    %35 = vector.load %arg2[%c0_13, %c0_14] : memref<8x128xf32, #tpu.memory_space<vmem>>, vector<8x128xf32>
    tpu.vector_store %arg2[%c0_13, %c0_14], %34 {strides = array<i32>} : memref<8x128xf32, #tpu.memory_space<vmem>>, vector<8x128xf32>,
    return
  }
  func.func @transform_0(%arg0: i32) -> (i32, i32) {
    %c0_i32 = arith.constant 0 : i32
    %c0_i32_0 = arith.constant 0 : i32
    return %arg0, %c0_i32 : i32, i32
  }
  func.func @transform_1(%arg0: i32) -> (i32, i32) {
    %c0_i32 = arith.constant 0 : i32
    %c0_i32_0 = arith.constant 0 : i32
    return %arg0, %c0_i32 : i32, i32
  }
}

</mosaic_0001>

<llo_original>
// kernel: tpu_custom_call.1
$region0: #{tpu_custom_call.1}
  #allocation0 [shape = 'u32[]', space=smem, size = 0x4, offset = 0x4, fixed_abs, tag = 'smem constant byte address 0x4 - core index']
  #allocation1 [shape = 'u32[144,128]{1,0:T(1,128)}', space=vmem, size = 0x12000, scoped, tag = 'internal scratch']
  %s0 = inlined_call_operand.hbm [shape: f32[16,128], index: 0, kind: input, shape index: {}]
  %s1 = inlined_call_operand.hbm [shape: f32[16,128], index: 1, kind: output, shape index: {}]
  %s2 = sld [smem:[#allocation0]]
  $region41: #{tpu_custom_call.1} parent=0
    _
  %s4 = ssub.s32 1, %s2
  %s5 = scalar_select 0, %s4, %s2
  $region1: #{tpu_custom_call.1} parent=0
    #allocation2 [shape = 'u8[8192]{0}', space=vmem, size = 0x2000, scoped, tag = 'input window, operand 0']
    #allocation3 [shape = 's32[2]{0}', space=sflag, size = 0x8, scoped, tag = 'scoped memory for tpu_custom_call.1']
    #allocation4 [shape = 's32[2]{0}', space=sflag, size = 0x8, scoped, tag = 'scoped memory for tpu_custom_call.1']
    #allocation5 [shape = 'u8[8192]{0}', space=vmem, size = 0x2000, scoped, tag = 'output window, operand 0']
    %6 = vsyncpa [#allocation3], 0
    %s7 = scalar_lea.sflag [#allocation3], 1
    %8 = vsyncpa %s7, 0
    %9 = vsyncpa [#allocation4], 0
    %s10 = scalar_lea.sflag [#allocation4], 1
    %11 = vsyncpa %s10, 0
    loop: start=0, step=1, limit=4
    $region2: #{tpu_custom_call.1} parent=1 // loop_pre_header
      _
    $region3: #{tpu_custom_call.1} parent=1 // loop_header
      %s13 = sphi 0, %s17
      %p14 = scmp.ge.s32.totalorder %s13, 4
      %s23 = sphi 0, %s25
      %s26 = sphi 0, %s23
      %s27 = sphi 0, %s26
      %s43 = sphi 0, %s27
      %s49 = sphi 0, %s51
      %s52 = sphi 0, %s49
      %s53 = sphi 0, %s52
      %s69 = sphi 0, %s53
    $region4: #{tpu_custom_call.1} parent=1 // loop_header_branch
      %16 = sbr.rel (%p14) target = $region8
    $region5: #{tpu_custom_call.1} parent=1 // loop_body
      %s18 = ssub.s32 %s13, 1
      %s19 = ssub.s32 %s13, 2
      %s20 = sadd.s32 %s13, 1
      %s21 = ssub.s32 %s13, %s20
      %p22 = scmp.eq.s32.totalorder %s21, 0
      %s24 = sadd.s32 %s23, 1
      %s25 = scalar_select %p22, %s23, %s24
      %p28 = pneg %p22
      %p29 = scmp.eq.s32.totalorder %s13, 1
      %p30 = por %p28, %p29
      %p31 = scmp.ne.s32.totalorder %s23, %s26
      %p32 = scmp.eq.s32.totalorder %s13, 0
      %p33 = por %p31, %p32
      %p34 = scmp.ne.s32.totalorder %s23, %s26
      %p35 = scmp.eq.s32.totalorder %s18, 1
      %p36 = por %p34, %p35
      %p37 = scmp.ne.s32.totalorder %s26, %s27
      %p38 = scmp.eq.s32.totalorder %s18, 0
      %p39 = por %p37, %p38
      %p40 = scmp.ne.s32.totalorder %s26, %s27
      %p41 = scmp.eq.s32.totalorder %s19, 1
      %p42 = por %p40, %p41
      %p44 = scmp.ne.s32.totalorder %s27, %s43
      %p45 = scmp.eq.s32.totalorder %s19, 0
      %p46 = por %p44, %p45
      %s47 = ssub.s32 %s13, %s20
      %p48 = scmp.eq.s32.totalorder %s47, 0
      %s50 = sadd.s32 %s49, 1
      %s51 = scalar_select %p48, %s49, %s50
      %p54 = pneg %p48
      %p55 = scmp.eq.s32.totalorder %s13, 1
      %p56 = por %p54, %p55
      %p57 = scmp.ne.s32.totalorder %s49, %s52
      %p58 = scmp.eq.s32.totalorder %s13, 0
      %p59 = por %p57, %p58
      %p60 = scmp.ne.s32.totalorder %s49, %s52
      %p61 = scmp.eq.s32.totalorder %s18, 1
      %p62 = por %p60, %p61
      %p63 = scmp.ne.s32.totalorder %s52, %s53
      %p64 = scmp.eq.s32.totalorder %s18, 0
      %p65 = por %p63, %p64
      %p66 = scmp.ne.s32.totalorder %s52, %s53
      %p67 = scmp.eq.s32.totalorder %s19, 1
      %p68 = por %p66, %p67
      %p70 = scmp.ne.s32.totalorder %s53, %s69
      %p71 = scmp.eq.s32.totalorder %s19, 0
      %p72 = por %p70, %p71
      %p73 = scmp.le.s32.totalorder 1, %s13
      %p74 = scmp.lt.s32.totalorder %s13, 3
      %p75 = pnand %p73, %p74
      %p76 = pneg %p75
      // Predicated region
      $region9: #{tpu_custom_call.1} parent=5 // pred_check
        _
      $region10: #{tpu_custom_call.1} parent=5 // pred_check_branch
        %78 = sbr.rel (%p75) target = $region12
      $region11: #{tpu_custom_call.1} parent=5 // pred_region
        %s79 = ssub.s32 %s13, 1
      $region12: #{tpu_custom_call.1} parent=5 // pred_fallthru
        _
      %p80 = scmp.lt.s32.totalorder %s13, 2
      // Predicated region
      $region13: #{tpu_custom_call.1} parent=5 // pred_check
        %p81 = pneg %p80
      $region14: #{tpu_custom_call.1} parent=5 // pred_check_branch
        %83 = sbr.rel (%p81) target = $region16
      $region15: #{tpu_custom_call.1} parent=5 // pred_region
        // Predicated region
        $region17: #{tpu_custom_call.1} parent=15 // pred_check
          %p84 = pneg %p33
        $region18: #{tpu_custom_call.1} parent=15 // pred_check_branch
          %86 = sbr.rel (%p84) target = $region20
        $region19: #{tpu_custom_call.1} parent=15 // pred_region
          %s87 = sand.u32 %s23, 1
          %s88 = scalar_lea.sflag [#allocation3], %s87
          %s89 = sand.u32 %s23, 1
          %s90 = smul.addr %s89, 8
          %s91 = scalar_lea.vmem [#allocation2], %s90
          %s93 = ssub.s32 128, 128
          %94 = vsyncadd %s88, %s93
          %s95 = smul.addr %s13, 128
          %s96 = scalar_lea.hbm %s0, %s95
          %s98 = sshll.u32 %s91, 4
          %s99 = int_to_ptr.vmem [resolvable:$true] %s98
          %101 = dma.hbm_to_vmem [thread:$0]  %s96, 128, %s99, %s88
        $region20: #{tpu_custom_call.1} parent=15 // pred_fallthru
          _
      $region16: #{tpu_custom_call.1} parent=5 // pred_fallthru
        _
      %p102 = scmp.le.s32.totalorder 1, %s13
      %p103 = scmp.lt.s32.totalorder %s13, 3
      %p104 = pnand %p102, %p103
      %p105 = pneg %p104
      // Predicated region
      $region21: #{tpu_custom_call.1} parent=5 // pred_check
        _
      $region22: #{tpu_custom_call.1} parent=5 // pred_check_branch
        %107 = sbr.rel (%p104) target = $region24
      $region23: #{tpu_custom_call.1} parent=5 // pred_region
        %s108 = ssub.s32 %s13, 1
        %s109 = sand.u32 %s26, 1
        %s110 = scalar_lea.sflag [#allocation3], %s109
        %s111 = sand.u32 %s26, 1
        %s112 = smul.addr %s111, 8
        %s113 = scalar_lea.vmem [#allocation2], %s112
        // Predicated region
        $region25: #{tpu_custom_call.1} parent=23 // pred_check
          %p114 = pneg %p39
        $region26: #{tpu_custom_call.1} parent=23 // pred_check_branch
          %116 = sbr.rel (%p114) target = $region28
        $region27: #{tpu_custom_call.1} parent=23 // pred_region
          %117 = dma.done %s110, 128
        $region28: #{tpu_custom_call.1} parent=23 // pred_fallthru
          _
        %s118 = sand.u32 %s26, 1
        %s119 = scalar_lea.sflag [#allocation3], %s118
        %s120 = sand.u32 %s26, 1
        %s121 = smul.addr %s120, 8
        %s122 = scalar_lea.vmem [#allocation2], %s121
        %p123 = pneg %p39
        %p124 = pneg %p36
        %p125 = pneg %p65
        %p126 = pneg %p62
        %s127 = sand.u32 %s52, 1
        %s128 = scalar_lea.sflag [#allocation4], %s127
        %s129 = sand.u32 %s52, 1
        %s130 = smul.addr %s129, 8
        %s131 = scalar_lea.vmem [#allocation5], %s130
        %v132 = vld [vmem:[%s113] sm:$0xff]
        %v133 = vmul.f32 %v132, 0.01
        %v134 = vadd.f32 %v133, 1.0
        %v135 = vmax.f32 %v134, 0.0
        %v136 = vlog2.pop %v135
        %v137 = vmul.f32 %v136, 0.6931472
        %v138 = vmul.f32 %v137, 100.0
        %v139 = vand.u32 2147483647, %v138
        %v140 = vsub.f32 0.0, %v139
        %v141 = vmul.f32 %v140, 1.442695
        %v142 = vpow.pop %v141
        %v143 = vadd.f32 %v142, 1.0
        %v144 = vlog2.pop %v143
        %v145 = vmul.f32 %v144, 0.6931472
        %v146 = vmul.f32 -0.5, %v142
        %v147 = vadd.f32 %v146, 1.0
        %v148 = vmul.f32 %v147, %v142
        %v149 = vand.u32 2147483647, %v142
        %vm150 = vcmp.lt.f32.partialorder %v149, 0.0004427343
        %v151 = vsel %vm150, %v148, %v145
        %v152 = vmul.f32 %v151, 0.01
        %v153 = vmax.f32 %v135, 1.0
        %v154 = vmul.f32 %v152, 0.16666667
        %v155 = vadd.f32 %v154, 0.5
        %v156 = vmul.f32 %v152, %v155
        %v157 = vadd.f32 %v156, 1.0
        %v158 = vmul.f32 %v152, %v157
        %v159 = vsub.f32 %v153, 1.0
        %v160 = vmul.f32 %v159, 100.0
        %v161 = vmul.f32 %v153, %v158
        %v162 = vmul.f32 %v161, 100.0
        %v163 = vadd.f32 %v160, %v162
        %164 = vst [vmem:[%s131] sm:$0xff] %v163
        %s165 = sand.u32 %s52, 1
        %s166 = scalar_lea.sflag [#allocation4], %s165
        %s167 = sand.u32 %s52, 1
        %s168 = smul.addr %s167, 8
        %s169 = scalar_lea.vmem [#allocation5], %s168
        // Predicated region
        $region29: #{tpu_custom_call.1} parent=23 // pred_check
          %p170 = pneg %p62
        $region30: #{tpu_custom_call.1} parent=23 // pred_check_branch
          %172 = sbr.rel (%p170) target = $region32
        $region31: #{tpu_custom_call.1} parent=23 // pred_region
          %s174 = ssub.s32 128, 128
          %175 = vsyncadd %s166, %s174
          %s176 = smul.addr %s18, 128
          %s177 = scalar_lea.hbm %s1, %s176
          %s179 = sshll.u32 %s169, 4
          %s180 = int_to_ptr.vmem [resolvable:$true] %s179
          %182 = dma.vmem_to_hbm [thread:$0]  %s180, 128, %s177, %s166
        $region32: #{tpu_custom_call.1} parent=23 // pred_fallthru
          _
      $region24: #{tpu_custom_call.1} parent=5 // pred_fallthru
        _
      %p183 = scmp.le.s32.totalorder 2, %s13
      // Predicated region
      $region33: #{tpu_custom_call.1} parent=5 // pred_check
        %p184 = pneg %p183
      $region34: #{tpu_custom_call.1} parent=5 // pred_check_branch
        %186 = sbr.rel (%p184) target = $region36
      $region35: #{tpu_custom_call.1} parent=5 // pred_region
        %s187 = ssub.s32 %s13, 2
        // Predicated region
        $region37: #{tpu_custom_call.1} parent=35 // pred_check
          %p188 = pneg %p68
        $region38: #{tpu_custom_call.1} parent=35 // pred_check_branch
          %190 = sbr.rel (%p188) target = $region40
        $region39: #{tpu_custom_call.1} parent=35 // pred_region
          %s191 = sand.u32 %s53, 1
          %s192 = scalar_lea.sflag [#allocation4], %s191
          %s193 = sand.u32 %s53, 1
          %s194 = smul.addr %s193, 8
          %s195 = scalar_lea.vmem [#allocation5], %s194
          %196 = dma.done %s192, 128
        $region40: #{tpu_custom_call.1} parent=35 // pred_fallthru
          _
      $region36: #{tpu_custom_call.1} parent=5 // pred_fallthru
        _
    $region6: #{tpu_custom_call.1} parent=1 // loop_footer
      %s17 = sadd.s32 1, %s13
    $region7: #{tpu_custom_call.1} parent=1 // loop_footer_branch
      %12 = sbr.rel target = $region3
    $region8: #{tpu_custom_call.1} parent=1 // loop_exit
      _
    %197 = vsyncpa [#allocation3], 1
    %s198 = scalar_lea.sflag [#allocation3], 1
    %199 = vsyncpa %s198, 1
    %200 = vsyncpa [#allocation4], 1
    %s201 = scalar_lea.sflag [#allocation4], 1
    %202 = vsyncpa %s201, 1

</llo_original>
